<compile_context>
chip_gen: v7x
topology: tpu7x:2x2x1
jax: 0.10.0
libtpu: 0.0.40
codegen_flags: <defaults>
</compile_context>

<pallas_src>
import math

import jax
import jax.numpy as jnp
from jax.experimental import pallas as pl
from jax.experimental.pallas import tpu as pltpu


def _kl_partial_kernel(mean_ref, logv_ref, part_ref):
    # One lane-dense (tm, N_pad) tile per grid step; all arithmetic in f32
    # (v5e has no bf16 VALU/EUP). exp() goes to the EUP, everything else VPU.
    m = mean_ref[...].astype(jnp.float32)
    lv = logv_ref[...].astype(jnp.float32)
    t = 1.0 + lv - m * m - jnp.exp(lv)
    # Per-block partial sum -> this step's private SMEM output slot.
    # (The -0.5 scale is applied once on the host, not per step.)
    part_ref[0, 0] = jnp.sum(t)


def _round_up(x, m):
    return ((x + m - 1) // m) * m


def kl_loss_sum(mean, logv, *, max_tile_bytes=4 * 1024 * 1024):
    """Pallas-computed  -0.5 * sum(1 + logv - mean**2 - exp(logv))."""
    assert mean.shape == logv.shape, (mean.shape, logv.shape)
    M, N = mean.shape
    itemsize = jnp.dtype(mean.dtype).itemsize
    # sublane multiple: 8 for 32-bit, 16 for 16-bit, 32 for 8-bit dtypes
    sub = max(8, 32 // itemsize)

    # Full lane dimension per block (padded to a multiple of 128).
    n_pad = _round_up(N, 128)

    # Rows per tile: largest multiple of `sub` such that one input tile is at
    # most max_tile_bytes, but never more rows than the (row-padded) input.
    rows_cap = max(sub, (max_tile_bytes // (n_pad * itemsize)) // sub * sub)
    tm = int(min(rows_cap, _round_up(M, sub)))
    m_pad = _round_up(M, tm)

    # Zero-pad ragged inputs; padded entries contribute exactly 0 to the sum.
    if (m_pad, n_pad) != (M, N):
        pad = ((0, m_pad - M), (0, n_pad - N))
        mean = jnp.pad(mean, pad)
        logv = jnp.pad(logv, pad)

    grid_m = m_pad // tm
    tile_bytes = tm * n_pad * itemsize
    # 2 inputs x 2 pipeline buffers x tile, plus headroom; keep well under the
    # v7x 64 MiB/TC budget while comfortably above the 16/32 MiB defaults.
    vmem_limit = int(min(96 << 20, max(32 << 20, 4 * tile_bytes + (4 << 20))))

    partials = pl.pallas_call(
        _kl_partial_kernel,
        out_shape=jax.ShapeDtypeStruct((grid_m, 1), jnp.float32),
        grid_spec=pltpu.PrefetchScalarGridSpec(
            num_scalar_prefetch=0,
            grid=(grid_m,),
            in_specs=[
                pl.BlockSpec((tm, n_pad), lambda i: (i, 0)),
                pl.BlockSpec((tm, n_pad), lambda i: (i, 0)),
            ],
            # One private SMEM scalar slot per grid step -> no carried state,
            # so the row axis is safe to shard across TensorCores.
            out_specs=pl.BlockSpec(
                (1, 1), lambda i: (i, 0), memory_space=pltpu.SMEM
            ),
        ),
        compiler_params=pltpu.CompilerParams(
            dimension_semantics=("parallel",),
            vmem_limit_bytes=vmem_limit,
        ),
    )(mean, logv)

    # Tiny finalize outside the kernel: sum grid_m scalars, scale once.
    return -0.5 * jnp.sum(partials)


class KLLossStandard:
    """JAX/Pallas port of KL_loss_standard (forward pass)."""

    def __init__(self, anneal_func):
        self.m_anneal_func = anneal_func
        if anneal_func == "logistic":
            self._f_logistic()
        elif anneal_func == "linear":
            self._f_linear()
        elif anneal_func == "cycle":
            self._f_linear_cycle()
        else:
            raise NotImplementedError

    def _f_linear_cycle(self, start=0.0, stop=1.0, n_epoch=4000, n_cycle=4,
                        ratio=0.5):
        period = n_epoch / n_cycle
        step_width = (stop - start) / (period * ratio)
        self.m_period = period
        self.m_step_width = step_width

    def _f_linear(self, x0=10000):
        self.m_x0 = x0

    def _f_logistic(self, k=0.0025, x0=2500):
        self.m_k = k
        self.m_x0 = x0

    def __call__(self, mean, logv, step):
        loss = kl_loss_sum(mean, logv)

        # scalar annealing schedule -- pure Python, same as the PyTorch module
        if self.m_anneal_func == "logistic":
            weight = float(1.0 / (1.0 + math.exp(-self.m_k * (step - self.m_x0))))
        elif self.m_anneal_func == "linear":
            weight = min(1, step / self.m_x0)
        elif self.m_anneal_func == "cycle":
            weight = 0.0
            # NOTE: hard-coded "* 4" matches the original PyTorch module exactly
            # (it assumes the default n_cycle=4).
            if step > self.m_period * 4:
                weight = 1.0
            else:
                tau = step % self.m_period
                weight = tau * self.m_step_width
                if weight > 1.0:
                    weight = 1.0
        else:
            raise NotImplementedError
        return loss, weight


if __name__ == "__main__":
    key = jax.random.PRNGKey(0)
    k_mean, k_logv, k_mean2, k_logv2 = jax.random.split(key, 4)

    # --- main example: [batch, latent_dim], fits in a single grid step ---
    batch, latent = 16, 256
    mean = jax.random.normal(k_mean, (batch, latent), dtype=jnp.float32)
    logv = jax.random.normal(k_logv, (batch, latent), dtype=jnp.float32) * 0.1

    kl = KLLossStandard("logistic")
    loss, weight = kl(mean, logv, step=1000)
    loss = jax.block_until_ready(loss)

    ref = -0.5 * jnp.sum(1.0 + logv - mean ** 2 - jnp.exp(logv))
    assert jnp.allclose(loss, ref, rtol=1e-5, atol=1e-3), (loss, ref)
    assert abs(weight - 1.0 / (1.0 + math.exp(-0.0025 * (1000 - 2500)))) < 1e-12

    # --- ragged shape (exercises zero-padding) ---
    mean_r = jax.random.normal(k_mean2, (13, 200), dtype=jnp.float32)
    logv_r = jax.random.normal(k_logv2, (13, 200), dtype=jnp.float32) * 0.1
    loss_r = jax.block_until_ready(kl_loss_sum(mean_r, logv_r))
    ref_r = -0.5 * jnp.sum(1.0 + logv_r - mean_r ** 2 - jnp.exp(logv_r))
    assert jnp.allclose(loss_r, ref_r, rtol=1e-5, atol=1e-3), (loss_r, ref_r)

    # --- multi-block path (small tile cap forces grid_m > 1, parallel axis) ---
    mean_b = jax.random.normal(k_mean2, (32, 256), dtype=jnp.float32)
    logv_b = jax.random.normal(k_logv2, (32, 256), dtype=jnp.float32) * 0.1
    loss_b = jax.block_until_ready(
        kl_loss_sum(mean_b, logv_b, max_tile_bytes=8 * 128 * 4)
    )
    ref_b = -0.5 * jnp.sum(1.0 + logv_b - mean_b ** 2 - jnp.exp(logv_b))
    assert jnp.allclose(loss_b, ref_b, rtol=1e-5, atol=1e-3), (loss_b, ref_b)

    # annealing schedule sanity checks (host-side scalars)
    kl_lin = KLLossStandard("linear")
    _, w_lin = kl_lin(mean, logv, step=5000)
    assert abs(w_lin - 0.5) < 1e-12
    kl_cyc = KLLossStandard("cycle")
    _, w_cyc = kl_cyc(mean, logv, step=5000)
    assert w_cyc == 1.0

    print("KERNEL_OK")
</pallas_src>

<mosaic_0001>
module attributes {stable_mosaic.version = 11 : i64} {
  func.func @_kl_partial_kernel(%arg0: i32, %arg1: memref<16x256xf32, #tpu.memory_space<vmem>>, %arg2: memref<16x256xf32, #tpu.memory_space<vmem>>, %arg3: memref<1x1xf32, #tpu.memory_space<smem>>) attributes {dimension_semantics = [#tpu.dimension_semantics<parallel>], iteration_bounds = array<i64: 1>, scalar_prefetch = 0 : i64, scratch_operands = 0 : i64, tpu.core_type = #tpu.core_type<tc>, window_params = [{transform_indices = @transform_0, window_bounds = array<i64: 16, 256>}, {transform_indices = @transform_1, window_bounds = array<i64: 16, 256>}, {transform_indices = @transform_2, window_bounds = array<i64: 1, 1>}]} {
    %c0 = arith.constant 0 : index
    %c0_0 = arith.constant 0 : index
    %0 = vector.load %arg1[%c0, %c0_0] : memref<16x256xf32, #tpu.memory_space<vmem>>, vector<16x256xf32>
    %c0_1 = arith.constant 0 : index
    %c0_2 = arith.constant 0 : index
    %1 = vector.load %arg2[%c0_1, %c0_2] : memref<16x256xf32, #tpu.memory_space<vmem>>, vector<16x256xf32>
    %cst = arith.constant 1.000000e+00 : f32
    %2 = vector.broadcast %cst : f32 to vector<16x256xf32>
    %3 = arith.addf %2, %1 : vector<16x256xf32>
    %4 = arith.mulf %0, %0 : vector<16x256xf32>
    %5 = arith.subf %3, %4 : vector<16x256xf32>
    %6 = math.exp %1 : vector<16x256xf32>
    %7 = arith.subf %5, %6 : vector<16x256xf32>
    %8 = vector.shape_cast %7 : vector<16x256xf32> to vector<1x16x256xf32>
    %cst_3 = arith.constant dense<0.000000e+00> : vector<1xf32>
    %9 = vector.multi_reduction <add>, %8, %cst_3 [1, 2] : vector<1x16x256xf32> to vector<1xf32>
    %10 = vector.shape_cast %9 : vector<1xf32> to vector<1x1x1xf32>
    %11 = vector.extract %10[0, 0, 0] : f32 from vector<1x1x1xf32>
    %c0_4 = arith.constant 0 : index
    %c0_5 = arith.constant 0 : index
    %12 = memref.load %arg3[%c0_4, %c0_5] : memref<1x1xf32, #tpu.memory_space<smem>>
    memref.store %11, %arg3[%c0_4, %c0_5] : memref<1x1xf32, #tpu.memory_space<smem>>
    return
  }
  func.func @transform_0(%arg0: i32) -> (i32, i32) {
    %c0_i32 = arith.constant 0 : i32
    %c0_i32_0 = arith.constant 0 : i32
    return %arg0, %c0_i32 : i32, i32
  }
  func.func @transform_1(%arg0: i32) -> (i32, i32) {
    %c0_i32 = arith.constant 0 : i32
    %c0_i32_0 = arith.constant 0 : i32
    return %arg0, %c0_i32 : i32, i32
  }
  func.func @transform_2(%arg0: i32) -> (i32, i32) {
    %c0_i32 = arith.constant 0 : i32
    %c0_i32_0 = arith.constant 0 : i32
    return %arg0, %c0_i32 : i32, i32
  }
}

</mosaic_0001>

<llo_original>
// kernel: tpu_custom_call.1
$region0: #{tpu_custom_call.1}
  #allocation0 [shape = 'u32[]', space=smem, size = 0x4, offset = 0x4, fixed_abs, tag = 'smem constant byte address 0x4 - core index']
  #allocation1 [shape = 'u32[144,128]{1,0:T(1,128)}', space=vmem, size = 0x12000, scoped, tag = 'internal scratch']
  %s0 = inlined_call_operand.hbm [shape: f32[16,256], index: 0, kind: input, shape index: {}]
  %s1 = inlined_call_operand.hbm [shape: f32[16,256], index: 1, kind: input, shape index: {}]
  %s2 = inlined_call_operand.hbm [shape: f32[1,1], index: 2, kind: output, shape index: {}]
  %s3 = sld [smem:[#allocation0]]
  $region26: #{tpu_custom_call.1} parent=0
    _
  %s5 = ssub.s32 1, %s3
  %s6 = scalar_select 0, %s5, %s3
  $region1: #{tpu_custom_call.1} parent=0
    #allocation2 [shape = 'u8[16384]{0}', space=vmem, size = 0x4000, scoped, tag = 'input window, operand 0, single buffered']
    #allocation3 [shape = 's32[1]{0}', space=sflag, size = 0x4, scoped, tag = 'scoped memory for tpu_custom_call.1']
    #allocation4 [shape = 's32[1]{0}', space=sflag, size = 0x4, scoped, tag = 'scoped memory for tpu_custom_call.1']
    #allocation5 [shape = 'u8[16384]{0}', space=vmem, size = 0x4000, scoped, tag = 'input window, operand 1, single buffered']
    #allocation6 [shape = 's32[1]{0}', space=sflag, size = 0x4, scoped, tag = 'scoped memory for tpu_custom_call.1']
    #allocation7 [shape = 'u8[512]{0}', space=smem, size = 0x200, scoped, tag = 'output window, operand 0, single buffered']
    %7 = vsyncpa [#allocation3], 0
    %8 = vsyncpa [#allocation6], 0
    %9 = vsyncpa [#allocation4], 0
    // Predicated region
    $region2: #{tpu_custom_call.1} parent=1 // pred_check
      _
    $region3: #{tpu_custom_call.1} parent=1 // pred_check_branch
      %11 = sbr.rel (0) target = $region5
    $region4: #{tpu_custom_call.1} parent=1 // pred_region
      %s13 = ssub.s32 512, 512
      %14 = vsyncadd [#allocation3], %s13
      %s15 = sshll.u32 [#allocation2], 4
      %s16 = int_to_ptr.vmem [resolvable:$true] %s15
      %21 = dma.hbm_to_vmem [thread:$0]  %s0, 512, %s16, [#allocation3], 256, 256, 16
    $region5: #{tpu_custom_call.1} parent=1 // pred_fallthru
      _
    // Predicated region
    $region6: #{tpu_custom_call.1} parent=1 // pred_check
      _
    $region7: #{tpu_custom_call.1} parent=1 // pred_check_branch
      %23 = sbr.rel (0) target = $region9
    $region8: #{tpu_custom_call.1} parent=1 // pred_region
      %s25 = ssub.s32 512, 512
      %26 = vsyncadd [#allocation6], %s25
      %s27 = sshll.u32 [#allocation5], 4
      %s28 = int_to_ptr.vmem [resolvable:$true] %s27
      %33 = dma.hbm_to_vmem [thread:$0]  %s1, 512, %s28, [#allocation6], 256, 256, 16
    $region9: #{tpu_custom_call.1} parent=1 // pred_fallthru
      _
    // Predicated region
    $region10: #{tpu_custom_call.1} parent=1 // pred_check
      _
    $region11: #{tpu_custom_call.1} parent=1 // pred_check_branch
      %35 = sbr.rel (0) target = $region13
    $region12: #{tpu_custom_call.1} parent=1 // pred_region
      %36 = dma.done [#allocation3], 512
    $region13: #{tpu_custom_call.1} parent=1 // pred_fallthru
      _
    // Predicated region
    $region14: #{tpu_custom_call.1} parent=1 // pred_check
      _
    $region15: #{tpu_custom_call.1} parent=1 // pred_check_branch
      %38 = sbr.rel (0) target = $region17
    $region16: #{tpu_custom_call.1} parent=1 // pred_region
      %39 = dma.done [#allocation6], 512
    $region17: #{tpu_custom_call.1} parent=1 // pred_fallthru
      _
    %v40 = vld [vmem:[#allocation2] sm:$0xff]
    %v41 = vld [vmem:[#allocation2 + $0x8] sm:$0xff]
    %v42 = vld [vmem:[#allocation2 + $0x10] sm:$0xff]
    %v43 = vld [vmem:[#allocation2 + $0x18] sm:$0xff]
    %v44 = vld [vmem:[#allocation5] sm:$0xff]
    %v45 = vld [vmem:[#allocation5 + $0x8] sm:$0xff]
    %v46 = vld [vmem:[#allocation5 + $0x10] sm:$0xff]
    %v47 = vld [vmem:[#allocation5 + $0x18] sm:$0xff]
    %v48 = vadd.f32 %v44, 1.0
    %v49 = vadd.f32 %v45, 1.0
    %v50 = vadd.f32 %v46, 1.0
    %v51 = vadd.f32 %v47, 1.0
    %v52 = vmul.f32 %v40, %v40
    %v53 = vmul.f32 %v41, %v41
    %v54 = vmul.f32 %v42, %v42
    %v55 = vmul.f32 %v43, %v43
    %v56 = vsub.f32 %v48, %v52
    %v57 = vsub.f32 %v49, %v53
    %v58 = vsub.f32 %v50, %v54
    %v59 = vsub.f32 %v51, %v55
    %v60 = vmul.f32 %v44, 1.442695
    %v61 = vpow.pop %v60
    %v62 = vmul.f32 %v45, 1.442695
    %v63 = vpow.pop %v62
    %v64 = vmul.f32 %v46, 1.442695
    %v65 = vpow.pop %v64
    %v66 = vmul.f32 %v47, 1.442695
    %v67 = vpow.pop %v66
    %v68 = vsub.f32 %v56, %v61
    %v69 = vsub.f32 %v57, %v63
    %v70 = vsub.f32 %v58, %v65
    %v71 = vsub.f32 %v59, %v67
    %v72 = vadd.f32 %v68, %v69
    %v73 = vadd.f32 %v72, %v70
    %v74 = vadd.f32 %v73, %v71
    %75 = vadd.xlane.f32.xlu0 %v74
    %v76 = vpop.xlane.xlu0 %75
    %v77 = vrot.slane %v76, 4
    %v78 = vadd.f32 %v76, %v77
    %v79 = vrot.slane %v78, 2
    %v80 = vadd.f32 %v78, %v79
    %v81 = vrot.slane %v80, 1
    %v82 = vadd.f32 %v80, %v81
    %s83 = vtos %v82
    %s84 = scalar_lea.smem [#allocation7], 0
    %85 = sst [smem:[%s84]] %s83
    // Predicated region
    $region18: #{tpu_custom_call.1} parent=1 // pred_check
      _
    $region19: #{tpu_custom_call.1} parent=1 // pred_check_branch
      %87 = sbr.rel (0) target = $region21
    $region20: #{tpu_custom_call.1} parent=1 // pred_region
      %s89 = ssub.s32 16, 16
      %90 = vsyncadd [#allocation4], %s89
      %93 = dma.smem_to_hbm [#allocation7], 16, %s2, [#allocation4]
    $region21: #{tpu_custom_call.1} parent=1 // pred_fallthru
      _
    // Predicated region
    $region22: #{tpu_custom_call.1} parent=1 // pred_check
      _
    $region23: #{tpu_custom_call.1} parent=1 // pred_check_branch
      %95 = sbr.rel (0) target = $region25
    $region24: #{tpu_custom_call.1} parent=1 // pred_region
      %96 = dma.done [#allocation4], 16
    $region25: #{tpu_custom_call.1} parent=1 // pred_fallthru
      _
    %97 = sfence
    %98 = vsyncpa [#allocation3], 1
    %99 = vsyncpa [#allocation6], 1
    %100 = vsyncpa [#allocation4], 1

</llo_original>
